<compile_context>
chip_gen: v5e
topology: v5e:2x2
jax: 0.10.0
libtpu: 0.0.40
codegen_flags: <defaults>
</compile_context>

<pallas_src>
import math
from functools import partial

import jax
import jax.numpy as jnp
from jax import lax
from jax.experimental import pallas as pl
from jax.experimental.pallas import tpu as pltpu


_INV_SQRT2 = 1.0 / math.sqrt(2.0)
_SQRT_2_OVER_PI = math.sqrt(2.0 / math.pi)


def _gelu_f32(h, approximate):
    if approximate:
        # tanh form -> EUP (its own VLIW slot, ~free next to the MXU/VPU work).
        return 0.5 * h * (1.0 + jnp.tanh(_SQRT_2_OVER_PI * (h + 0.044715 * h * h * h)))
    # exact erf form, matching torch.nn.GELU default
    return 0.5 * h * (1.0 + lax.erf(h * _INV_SQRT2))


def _rezero_ffn_kernel(x_ref, w1_ref, b1_ref, w2_ref, b2_ref, g_ref, o_ref,
                       *scratch, approximate, mxu_dtype, single_k):
    # Grid: (row tiles i [parallel], hidden tiles k [arbitrary / reduction]).
    # x_ref:(tm,D)  w1_ref:(D,th)  b1_ref:(1,th)  w2_ref:(th,D)  b2_ref:(1,D)
    # g_ref: SMEM (1,) scalar gate.
    # scratch: () when o_ref itself is the f32 accumulator (or single hidden step),
    #          (acc_ref,) = f32 (tm,D) VMEM accumulator otherwise.
    h = jnp.dot(x_ref[...].astype(mxu_dtype), w1_ref[...].astype(mxu_dtype),
                preferred_element_type=jnp.float32)
    h = h + b1_ref[...].astype(jnp.float32)
    act = _gelu_f32(h, approximate)
    part = jnp.dot(act.astype(mxu_dtype), w2_ref[...].astype(mxu_dtype),
                   preferred_element_type=jnp.float32)

    if single_k:
        # Weight-resident / single hidden step: no accumulator needed at all.
        out = (part + b2_ref[...].astype(jnp.float32)) * g_ref[0]
        o_ref[...] = out.astype(o_ref.dtype)
        return

    acc_ref = scratch[0] if scratch else o_ref     # o_ref used only when it is f32
    k = pl.program_id(1)

    @pl.when(k == 0)
    def _():
        # First partial product written directly (no zero-init pass); fold b2 in here.
        acc_ref[...] = part + b2_ref[...].astype(jnp.float32)

    @pl.when(k > 0)
    def _():
        acc_ref[...] += part

    @pl.when(k == pl.num_programs(1) - 1)
    def _():
        out = acc_ref[...].astype(jnp.float32) * g_ref[0]    # ReZero scalar gate
        o_ref[...] = out.astype(o_ref.dtype)


def _physical_vmem_bytes():
    """Per-TensorCore VMEM capacity; conservative fallback if undetectable."""
    try:
        info = pltpu.get_tpu_info()
        v = getattr(info, "vmem_capacity_bytes", None)
        if v:
            return int(v)
    except Exception:
        pass
    try:
        kind = jax.devices()[0].device_kind.lower()
        if ("v4" in kind) or ("v5" in kind) or ("v6" in kind):
            return 128 * 1024 * 1024
    except Exception:
        pass
    return 64 * 1024 * 1024   # conservative: v7x per-TC VMEM


def _pick_tiles(M, dim, hidden, x_dtype, w_dtype, out_dtype, budget, tm=None, th=None):
    """Choose (tm, th) under the VMEM budget. Preference order:
       1) weight residency (th=hidden) with the biggest row tile that fits,
       2) streamed hidden with the biggest tm, then biggest th, that fits."""
    if tm is not None and th is not None:
        return tm, th

    xb = jnp.dtype(x_dtype).itemsize
    wb = jnp.dtype(w_dtype).itemsize
    ob = jnp.dtype(out_dtype).itemsize

    def est(tm_, th_):
        nk = max(hidden // th_, 1)
        needs_scratch = (nk > 1) and (jnp.dtype(out_dtype) != jnp.dtype(jnp.float32))
        v = 2 * tm_ * dim * xb            # x tiles (double buffered)
        v += 2 * dim * th_ * wb           # W1 tiles
        v += 2 * th_ * wb                 # b1
        v += 2 * th_ * dim * wb           # W2 tiles
        v += 2 * dim * wb                 # b2
        v += 2 * tm_ * dim * ob           # out tiles
        v += (tm_ * dim * 4) if needs_scratch else 0   # f32 accumulator
        v += 2 * tm_ * th_ * 4            # h / act intermediates (rough)
        return v

    # Row-tile candidates: big enough to stay MXU-bound when streaming weights,
    # but keep M//tm >= 2 so both v7x TensorCores get row tiles.
    if tm is not None:
        tm_cands = [tm]
    else:
        cap = min(1024, max(M // 2, 8))
        tm_cands = [c for c in (1024, 512, 256, 128, 64, 32, 16, 8)
                    if c <= cap and M % c == 0]
        if not tm_cands:
            tm_cands = [M]                # awkward M: single full-extent row block

    # Hidden-tile candidates: residency first, then large streaming tiles (128 last).
    if th is not None:
        th_resident = [th] if th == hidden else []
        th_stream = [] if th == hidden else [th]
    else:
        th_resident = [hidden]
        th_stream = [c for c in (2048, 1024, 512, 256, 128)
                     if c < hidden and hidden % c == 0]

    for t_ in tm_cands:                   # pass 1: weight residency
        for h_ in th_resident:
            if est(t_, h_) <= budget:
                return t_, h_
    for t_ in tm_cands:                   # pass 2: stream the hidden dimension
        for h_ in th_stream:
            if est(t_, h_) <= budget:
                return t_, h_
    return tm_cands[-1], (th_stream[-1] if th_stream else hidden)


def rezero_ffn(x, w1, b1, w2, b2, g, *, tm=None, th=None, approximate=None,
               cast_matmul_to_bf16=False):
    """ReZero(FeedForward)(x) = g * (GELU(x @ w1 + b1) @ w2 + b2).

    x: (..., dim). w1: (dim, hidden), b1: (hidden,), w2: (hidden, dim), b2: (dim,),
    g: scalar / shape-(1,) array (the ReZero resweight, zero-initialized).
    """
    orig_shape = x.shape
    dim = orig_shape[-1]
    hidden = w1.shape[1]
    x2 = x.reshape(-1, dim)
    M = x2.shape[0]
    out_dtype = x.dtype

    if approximate is None:
        # Small dims are VALU-bound -> tanh GELU (EUP). Large dims: erf hides under MXU.
        approximate = dim <= 512

    mxu_dtype = (jnp.bfloat16
                 if (cast_matmul_to_bf16 and x.dtype == jnp.float32)
                 else x.dtype)

    phys = _physical_vmem_bytes()
    if phys >= 128 * 1024 * 1024:
        vmem_limit = phys - 24 * 1024 * 1024          # ~104 MiB on v5e/v6e
    else:
        vmem_limit = (phys * 3) // 4                  # ~48 MiB on v7x
    budget = int(vmem_limit * 0.9)

    tm, th = _pick_tiles(M, dim, hidden, x.dtype, w1.dtype, out_dtype, budget, tm, th)
    assert M % tm == 0, f"tm={tm} must divide M={M}"
    assert hidden % th == 0, f"th={th} must divide hidden={hidden}"

    nk = hidden // th
    single_k = (nk == 1)
    # float32 output accumulates directly into o_ref; bf16 output needs an f32 scratch.
    needs_scratch = (not single_k) and (jnp.dtype(out_dtype) != jnp.dtype(jnp.float32))

    b1_2d = b1.reshape(1, hidden)
    b2_2d = b2.reshape(1, dim)
    g1 = jnp.asarray(g, jnp.float32).reshape(1)

    grid = (M // tm, nk)
    kernel = partial(_rezero_ffn_kernel, approximate=approximate,
                     mxu_dtype=mxu_dtype, single_k=single_k)
    scratch_shapes = [pltpu.VMEM((tm, dim), jnp.float32)] if needs_scratch else []

    # TODO(synk): for model dims < 128 (like the toy f32 test) the output lane width is
    # sub-128 -> masked stores; transformer-scale dims (multiples of 128) are lane-dense.
    out = pl.pallas_call(
        kernel,
        out_shape=jax.ShapeDtypeStruct((M, dim), out_dtype),
        grid_spec=pltpu.PrefetchScalarGridSpec(
            num_scalar_prefetch=0,
            grid=grid,
            in_specs=[
                pl.BlockSpec((tm, dim), lambda i, k: (i, 0)),        # x row tile
                pl.BlockSpec((dim, th), lambda i, k: (0, k)),        # W1 (resident if th=hidden)
                pl.BlockSpec((1, th), lambda i, k: (0, k)),          # b1
                pl.BlockSpec((th, dim), lambda i, k: (k, 0)),        # W2 (resident if th=hidden)
                pl.BlockSpec((1, dim), lambda i, k: (0, 0)),         # b2
                pl.BlockSpec(memory_space=pltpu.MemorySpace.SMEM),   # g scalar gate
            ],
            out_specs=pl.BlockSpec((tm, dim), lambda i, k: (i, 0)),
            scratch_shapes=scratch_shapes,
        ),
        compiler_params=pltpu.CompilerParams(
            dimension_semantics=("parallel", "arbitrary"),
            vmem_limit_bytes=int(vmem_limit),
        ),
    )(x2, w1, b1_2d, w2, b2_2d, g1)

    return out.reshape(orig_shape)


def init_params(key, dim, mult=4, dtype=jnp.float32):
    """nn.Linear-style init (uniform +/- 1/sqrt(fan_in)); weights stored as (in, out)."""
    hidden = dim * mult
    k1, k2, k3, k4 = jax.random.split(key, 4)
    lim1 = 1.0 / math.sqrt(dim)
    lim2 = 1.0 / math.sqrt(hidden)
    w1 = jax.random.uniform(k1, (dim, hidden), dtype, -lim1, lim1)
    b1 = jax.random.uniform(k2, (hidden,), dtype, -lim1, lim1)
    w2 = jax.random.uniform(k3, (hidden, dim), dtype, -lim2, lim2)
    b2 = jax.random.uniform(k4, (dim,), dtype, -lim2, lim2)
    return w1, b1, w2, b2


def rezero_ffn_ref(x, w1, b1, w2, b2, g, approximate=False):
    xf = x.astype(jnp.float32)
    h = xf @ w1.astype(jnp.float32) + b1.astype(jnp.float32)
    act = _gelu_f32(h, approximate)
    out = act @ w2.astype(jnp.float32) + b2.astype(jnp.float32)
    return out * jnp.asarray(g, jnp.float32).reshape(())


if __name__ == "__main__":
    key = jax.random.PRNGKey(0)
    kx, kp, kx2, kp2 = jax.random.split(key, 4)

    # ---- 1) small f32, auto tiles (weight-resident single hidden step) ----
    batch, seq, dim, mult = 2, 8, 32, 4
    x = jax.random.normal(kx, (batch, seq, dim), jnp.float32)
    w1, b1, w2, b2 = init_params(kp, dim, mult, jnp.float32)

    g0 = jnp.zeros((1,), jnp.float32)            # ReZero init: output must be exactly 0
    out0 = jax.block_until_ready(rezero_ffn(x, w1, b1, w2, b2, g0))
    assert out0.shape == x.shape
    assert jnp.allclose(out0, jnp.zeros_like(out0)), "g=0 should zero the output"

    g1 = jnp.array([0.37], jnp.float32)
    out1 = jax.block_until_ready(rezero_ffn(x, w1, b1, w2, b2, g1))
    ref1 = rezero_ffn_ref(x, w1, b1, w2, b2, g1, approximate=True)   # dim<=512 -> tanh GELU
    assert jnp.allclose(out1, ref1, atol=5e-4, rtol=5e-4), "mismatch vs reference (f32, auto)"

    # ---- 2) f32, forced hidden streaming (nk>1): accumulates directly into o_ref ----
    d2, m2 = 128, 4                              # M=128, hidden=512
    x2 = jax.random.normal(kx2, (2, 64, d2), jnp.float32)
    w1b, b1b, w2b, b2b = init_params(kp2, d2, m2, jnp.float32)
    gs = jnp.array([0.8], jnp.float32)
    out2 = jax.block_until_ready(rezero_ffn(x2, w1b, b1b, w2b, b2b, gs, tm=64, th=128))
    ref2 = rezero_ffn_ref(x2, w1b, b1b, w2b, b2b, gs, approximate=True)
    assert jnp.allclose(out2, ref2, atol=5e-4, rtol=5e-4), "mismatch vs reference (f32, streamed)"

    # ---- 3) bf16, forced streaming (nk>1) with f32 VMEM accumulator scratch ----
    xb = x2.astype(jnp.bfloat16)
    w1c, b1c, w2c, b2c = (w1b.astype(jnp.bfloat16), b1b.astype(jnp.bfloat16),
                          w2b.astype(jnp.bfloat16), b2b.astype(jnp.bfloat16))
    outb = jax.block_until_ready(rezero_ffn(xb, w1c, b1c, w2c, b2c, gs, tm=64, th=128))
    refb = rezero_ffn_ref(xb, w1c, b1c, w2c, b2c, gs, approximate=True)
    assert jnp.allclose(outb.astype(jnp.float32), refb, atol=3e-2, rtol=5e-2), \
        "mismatch vs reference (bf16, streamed)"

    # ---- 4) bf16, auto tiles (weight-resident path) ----
    outc = jax.block_until_ready(rezero_ffn(xb, w1c, b1c, w2c, b2c, gs))
    assert jnp.allclose(outc.astype(jnp.float32), refb, atol=3e-2, rtol=5e-2), \
        "mismatch vs reference (bf16, resident)"

    print("KERNEL_OK")
</pallas_src>

<mosaic_0001>
module attributes {stable_mosaic.version = 11 : i64} {
  func.func @_rezero_ffn_kernel(%arg0: i32, %arg1: i32, %arg2: memref<8x32xf32, #tpu.memory_space<vmem>>, %arg3: memref<32x128xf32, #tpu.memory_space<vmem>>, %arg4: memref<1x128xf32, #tpu.memory_space<vmem>>, %arg5: memref<128x32xf32, #tpu.memory_space<vmem>>, %arg6: memref<1x32xf32, #tpu.memory_space<vmem>>, %arg7: memref<1xf32, #tpu.memory_space<smem>>, %arg8: memref<8x32xf32, #tpu.memory_space<vmem>>) attributes {dimension_semantics = [#tpu.dimension_semantics<parallel>, #tpu.dimension_semantics<arbitrary>], iteration_bounds = array<i64: 2, 1>, scalar_prefetch = 0 : i64, scratch_operands = 0 : i64, tpu.core_type = #tpu.core_type<tc>, window_params = [{transform_indices = @transform_0, window_bounds = array<i64: 8, 32>}, {transform_indices = @transform_1, window_bounds = array<i64: 32, 128>}, {transform_indices = @transform_2, window_bounds = array<i64: 1, 128>}, {transform_indices = @transform_3, window_bounds = array<i64: 128, 32>}, {pipeline_mode = #tpu.pipeline_mode<synchronous>, transform_indices = @transform_4, window_bounds = array<i64: 1, 32>}, {transform_indices = @transform_5, window_bounds = array<i64: 1>}, {transform_indices = @transform_6, window_bounds = array<i64: 8, 32>}]} {
    %c0 = arith.constant 0 : index
    %c0_0 = arith.constant 0 : index
    %0 = vector.load %arg2[%c0, %c0_0] : memref<8x32xf32, #tpu.memory_space<vmem>>, vector<8x32xf32>
    %c0_1 = arith.constant 0 : index
    %c0_2 = arith.constant 0 : index
    %1 = vector.load %arg3[%c0_1, %c0_2] : memref<32x128xf32, #tpu.memory_space<vmem>>, vector<32x128xf32>
    %cst = arith.constant dense<0.000000e+00> : vector<8x128xf32>
    %2 = tpu.matmul %0, %1, %cst {dimension_numbers = #tpu.dot_dimension_numbers<[1], [0], [0], [1], [0, 0, 1, 1], [], []>} : vector<8x32xf32>, vector<32x128xf32>, vector<8x128xf32> -> vector<8x128xf32>
    %c0_3 = arith.constant 0 : index
    %c0_4 = arith.constant 0 : index
    %3 = vector.load %arg4[%c0_3, %c0_4] : memref<1x128xf32, #tpu.memory_space<vmem>>, vector<1x128xf32>
    %4 = vector.broadcast %3 : vector<1x128xf32> to vector<8x128xf32>
    %5 = arith.addf %2, %4 : vector<8x128xf32>
    %cst_5 = arith.constant 5.000000e-01 : f32
    %6 = vector.broadcast %cst_5 : f32 to vector<8x128xf32>
    %7 = arith.mulf %6, %5 : vector<8x128xf32>
    %cst_6 = arith.constant 4.471500e-02 : f32
    %8 = vector.broadcast %cst_6 : f32 to vector<8x128xf32>
    %9 = arith.mulf %8, %5 : vector<8x128xf32>
    %10 = arith.mulf %9, %5 : vector<8x128xf32>
    %11 = arith.mulf %10, %5 : vector<8x128xf32>
    %12 = arith.addf %5, %11 : vector<8x128xf32>
    %cst_7 = arith.constant 0.797884583 : f32
    %13 = vector.broadcast %cst_7 : f32 to vector<8x128xf32>
    %14 = arith.mulf %13, %12 : vector<8x128xf32>
    %15 = math.tanh %14 : vector<8x128xf32>
    %cst_8 = arith.constant 1.000000e+00 : f32
    %16 = vector.broadcast %cst_8 : f32 to vector<8x128xf32>
    %17 = arith.addf %16, %15 : vector<8x128xf32>
    %18 = arith.mulf %7, %17 : vector<8x128xf32>
    %c0_9 = arith.constant 0 : index
    %c0_10 = arith.constant 0 : index
    %19 = vector.load %arg5[%c0_9, %c0_10] : memref<128x32xf32, #tpu.memory_space<vmem>>, vector<128x32xf32>
    %cst_11 = arith.constant dense<0.000000e+00> : vector<8x32xf32>
    %20 = tpu.matmul %18, %19, %cst_11 {dimension_numbers = #tpu.dot_dimension_numbers<[1], [0], [0], [1], [0, 0, 1, 1], [], []>} : vector<8x128xf32>, vector<128x32xf32>, vector<8x32xf32> -> vector<8x32xf32>
    %c0_12 = arith.constant 0 : index
    %c0_13 = arith.constant 0 : index
    %21 = vector.load %arg6[%c0_12, %c0_13] : memref<1x32xf32, #tpu.memory_space<vmem>>, vector<1x32xf32>
    %22 = vector.broadcast %21 : vector<1x32xf32> to vector<8x32xf32>
    %23 = arith.addf %20, %22 : vector<8x32xf32>
    %c0_14 = arith.constant 0 : index
    %24 = memref.load %arg7[%c0_14] : memref<1xf32, #tpu.memory_space<smem>>
    %25 = vector.broadcast %24 : f32 to vector<8x32xf32>
    %26 = arith.mulf %23, %25 : vector<8x32xf32>
    %c0_15 = arith.constant 0 : index
    %c0_16 = arith.constant 0 : index
    %27 = vector.load %arg8[%c0_15, %c0_16] : memref<8x32xf32, #tpu.memory_space<vmem>>, vector<8x32xf32>
    tpu.vector_store %arg8[%c0_15, %c0_16], %26 {strides = array<i32>} : memref<8x32xf32, #tpu.memory_space<vmem>>, vector<8x32xf32>,
    return
  }
  func.func @transform_0(%arg0: i32, %arg1: i32) -> (i32, i32) {
    %c0_i32 = arith.constant 0 : i32
    %c0_i32_0 = arith.constant 0 : i32
    return %arg0, %c0_i32 : i32, i32
  }
  func.func @transform_1(%arg0: i32, %arg1: i32) -> (i32, i32) {
    %c0_i32 = arith.constant 0 : i32
    %c0_i32_0 = arith.constant 0 : i32
    return %c0_i32, %arg1 : i32, i32
  }
  func.func @transform_2(%arg0: i32, %arg1: i32) -> (i32, i32) {
    %c0_i32 = arith.constant 0 : i32
    %c0_i32_0 = arith.constant 0 : i32
    return %c0_i32, %arg1 : i32, i32
  }
  func.func @transform_3(%arg0: i32, %arg1: i32) -> (i32, i32) {
    %c0_i32 = arith.constant 0 : i32
    %c0_i32_0 = arith.constant 0 : i32
    return %arg1, %c0_i32 : i32, i32
  }
  func.func @transform_4(%arg0: i32, %arg1: i32) -> (i32, i32) {
    %c0_i32 = arith.constant 0 : i32
    %c0_i32_0 = arith.constant 0 : i32
    %c0_i32_1 = arith.constant 0 : i32
    return %c0_i32, %c0_i32_0 : i32, i32
  }
  func.func @transform_5(%arg0: i32, %arg1: i32) -> i32 {
    %c0_i32 = arith.constant 0 : i32
    %c0_i32_0 = arith.constant 0 : i32
    return %c0_i32 : i32
  }
  func.func @transform_6(%arg0: i32, %arg1: i32) -> (i32, i32) {
    %c0_i32 = arith.constant 0 : i32
    %c0_i32_0 = arith.constant 0 : i32
    return %arg0, %c0_i32 : i32, i32
  }
}

</mosaic_0001>

<llo_original>
// kernel: tpu_custom_call.1
$region0: #{tpu_custom_call.1}
  #allocation0 [shape = 'u32[]', space=smem, size = 0x4, offset = 0x4, fixed_abs, tag = 'smem constant byte address 0x4 - core index']
  #allocation1 [shape = 'u32[72,128]{1,0:T(1,128)}', space=vmem, size = 0x9000, scoped, tag = 'internal scratch']
  #allocation2 [shape = 'f32[1]{0:T(128)S(6)}', space=smem, size = 0x200, scoped, tag = 'scoped memory for tpu_custom_call.1']
  %s0 = inlined_call_operand.vmem [shape: f32[16,32], index: 0, kind: input, shape index: {}]
  %s1 = inlined_call_operand.vmem [shape: f32[32,128], index: 1, kind: input, shape index: {}]
  %s2 = inlined_call_operand.vmem [shape: f32[1,128], index: 2, kind: input, shape index: {}]
  %s3 = inlined_call_operand.vmem [shape: f32[128,32], index: 3, kind: input, shape index: {}]
  %s4 = inlined_call_operand.vmem [shape: f32[1,32], index: 4, kind: input, shape index: {}]
  %s5 = inlined_call_operand.<no memory space> [shape: f32[1], index: 5, kind: input, shape index: {}]
  %s6 = inlined_call_operand.hbm [shape: f32[16,32], index: 6, kind: output, shape index: {}]
  %s7 = sld [smem:[#allocation0]]
  $region57: #{tpu_custom_call.1} parent=0
    _
  %s9 = ssub.s32 1, %s7
  %s10 = scalar_select 0, %s9, %s7
  %11 = sst [smem:[#allocation2]] %s5
  $region1: #{tpu_custom_call.1} parent=0
    #allocation3 [shape = 'u8[8192]{0}', space=vmem, size = 0x2000, scoped, tag = 'output window, operand 0']
    #allocation4 [shape = 's32[2]{0}', space=sflag, size = 0x8, scoped, tag = 'scoped memory for tpu_custom_call.1']
    %12 = vsyncpa [#allocation4], 0
    %s13 = scalar_lea.sflag [#allocation4], 1
    %14 = vsyncpa %s13, 0
    loop: start=0, step=1, limit=4
    $region2: #{tpu_custom_call.1} parent=1 // loop_pre_header
      _
    $region3: #{tpu_custom_call.1} parent=1 // loop_header
      %s16 = sphi 0, %s20
      %p17 = scmp.ge.s32.totalorder %s16, 4
      %s23 = sphi 0, %s35
      %s24 = sphi 0, %s31
      %s25 = sphi 0, %s23
      %s26 = sphi 0, %s24
      %s27 = sphi 0, %s25
      %s28 = sphi 0, %s26
      %s38 = sphi 0, %s40
      %s41 = sphi 0, %s38
      %s42 = sphi 0, %s41
      %s58 = sphi 0, %s42
      %s64 = sphi 0, %s66
      %s67 = sphi 0, %s64
      %s68 = sphi 0, %s67
      %s84 = sphi 0, %s68
      %s90 = sphi 0, %s92
      %s93 = sphi 0, %s90
      %s94 = sphi 0, %s93
      %s110 = sphi 0, %s94
      %s116 = sphi 0, %s118
      %s119 = sphi 0, %s116
      %s120 = sphi 0, %s119
      %s136 = sphi 0, %s120
      %s140 = sphi 0, %s140
      %s142 = sphi 0, %s140
      %s143 = sphi 0, %s142
      %s157 = sphi 0, %s143
      %s161 = sphi 0, %s161
      %s163 = sphi 0, %s161
      %s164 = sphi 0, %s163
      %s178 = sphi 0, %s164
      %s184 = sphi 0, %s186
      %s187 = sphi 0, %s184
      %s188 = sphi 0, %s187
      %s204 = sphi 0, %s188
    $region4: #{tpu_custom_call.1} parent=1 // loop_header_branch
      %19 = sbr.rel (%p17) target = $region8
    $region5: #{tpu_custom_call.1} parent=1 // loop_body
      %s21 = ssub.s32 %s16, 1
      %s22 = ssub.s32 %s16, 2
      %s29 = sadd.s32 1, %s24
      %p30 = scmp.ge.s32.totalorder %s29, 1
      %s31 = scalar_select %p30, 0, %s29
      %s32 = sadd.s32 1, %s23
      %s33 = scalar_select %p30, %s32, %s23
      %p34 = scmp.ge.s32.totalorder %s33, 2
      %s35 = scalar_select %p34, 0, %s33
      %s36 = ssub.s32 %s23, %s35
      %p37 = scmp.eq.s32.totalorder %s36, 0
      %s39 = sadd.s32 %s38, 1
      %s40 = scalar_select %p37, %s38, %s39
      %p43 = pneg %p37
      %p44 = scmp.eq.s32.totalorder %s16, 1
      %p45 = por %p43, %p44
      %p46 = scmp.ne.s32.totalorder %s38, %s41
      %p47 = scmp.eq.s32.totalorder %s16, 0
      %p48 = por %p46, %p47
      %p49 = scmp.ne.s32.totalorder %s38, %s41
      %p50 = scmp.eq.s32.totalorder %s21, 1
      %p51 = por %p49, %p50
      %p52 = scmp.ne.s32.totalorder %s41, %s42
      %p53 = scmp.eq.s32.totalorder %s21, 0
      %p54 = por %p52, %p53
      %p55 = scmp.ne.s32.totalorder %s41, %s42
      %p56 = scmp.eq.s32.totalorder %s22, 1
      %p57 = por %p55, %p56
      %p59 = scmp.ne.s32.totalorder %s42, %s58
      %p60 = scmp.eq.s32.totalorder %s22, 0
      %p61 = por %p59, %p60
      %s62 = ssub.s32 %s24, %s31
      %p63 = scmp.eq.s32.totalorder %s62, 0
      %s65 = sadd.s32 %s64, 1
      %s66 = scalar_select %p63, %s64, %s65
      %p69 = pneg %p63
      %p70 = scmp.eq.s32.totalorder %s16, 1
      %p71 = por %p69, %p70
      %p72 = scmp.ne.s32.totalorder %s64, %s67
      %p73 = scmp.eq.s32.totalorder %s16, 0
      %p74 = por %p72, %p73
      %p75 = scmp.ne.s32.totalorder %s64, %s67
      %p76 = scmp.eq.s32.totalorder %s21, 1
      %p77 = por %p75, %p76
      %p78 = scmp.ne.s32.totalorder %s67, %s68
      %p79 = scmp.eq.s32.totalorder %s21, 0
      %p80 = por %p78, %p79
      %p81 = scmp.ne.s32.totalorder %s67, %s68
      %p82 = scmp.eq.s32.totalorder %s22, 1
      %p83 = por %p81, %p82
      %p85 = scmp.ne.s32.totalorder %s68, %s84
      %p86 = scmp.eq.s32.totalorder %s22, 0
      %p87 = por %p85, %p86
      %s88 = ssub.s32 %s24, %s31
      %p89 = scmp.eq.s32.totalorder %s88, 0
      %s91 = sadd.s32 %s90, 1
      %s92 = scalar_select %p89, %s90, %s91
      %p95 = pneg %p89
      %p96 = scmp.eq.s32.totalorder %s16, 1
      %p97 = por %p95, %p96
      %p98 = scmp.ne.s32.totalorder %s90, %s93
      %p99 = scmp.eq.s32.totalorder %s16, 0
      %p100 = por %p98, %p99
      %p101 = scmp.ne.s32.totalorder %s90, %s93
      %p102 = scmp.eq.s32.totalorder %s21, 1
      %p103 = por %p101, %p102
      %p104 = scmp.ne.s32.totalorder %s93, %s94
      %p105 = scmp.eq.s32.totalorder %s21, 0
      %p106 = por %p104, %p105
      %p107 = scmp.ne.s32.totalorder %s93, %s94
      %p108 = scmp.eq.s32.totalorder %s22, 1
      %p109 = por %p107, %p108
      %p111 = scmp.ne.s32.totalorder %s94, %s110
      %p112 = scmp.eq.s32.totalorder %s22, 0
      %p113 = por %p111, %p112
      %s114 = ssub.s32 %s24, %s31
      %p115 = scmp.eq.s32.totalorder %s114, 0
      %s117 = sadd.s32 %s116, 1
      %s118 = scalar_select %p115, %s116, %s117
      %p121 = pneg %p115
      %p122 = scmp.eq.s32.totalorder %s16, 1
      %p123 = por %p121, %p122
      %p124 = scmp.ne.s32.totalorder %s116, %s119
      %p125 = scmp.eq.s32.totalorder %s16, 0
      %p126 = por %p124, %p125
      %p127 = scmp.ne.s32.totalorder %s116, %s119
      %p128 = scmp.eq.s32.totalorder %s21, 1
      %p129 = por %p127, %p128
      %p130 = scmp.ne.s32.totalorder %s119, %s120
      %p131 = scmp.eq.s32.totalorder %s21, 0
      %p132 = por %p130, %p131
      %p133 = scmp.ne.s32.totalorder %s119, %s120
      %p134 = scmp.eq.s32.totalorder %s22, 1
      %p135 = por %p133, %p134
      %p137 = scmp.ne.s32.totalorder %s120, %s136
      %p138 = scmp.eq.s32.totalorder %s22, 0
      %p139 = por %p137, %p138
      %s141 = sadd.s32 %s140, 1
      %p144 = scmp.eq.s32.totalorder %s16, 1
      %p145 = scmp.ne.s32.totalorder %s140, %s142
      %p146 = scmp.eq.s32.totalorder %s16, 0
      %p147 = por %p145, %p146
      %p148 = scmp.ne.s32.totalorder %s140, %s142
      %p149 = scmp.eq.s32.totalorder %s21, 1
      %p150 = por %p148, %p149
      %p151 = scmp.ne.s32.totalorder %s142, %s143
      %p152 = scmp.eq.s32.totalorder %s21, 0
      %p153 = por %p151, %p152
      %p154 = scmp.ne.s32.totalorder %s142, %s143
      %p155 = scmp.eq.s32.totalorder %s22, 1
      %p156 = por %p154, %p155
      %p158 = scmp.ne.s32.totalorder %s143, %s157
      %p159 = scmp.eq.s32.totalorder %s22, 0
      %p160 = por %p158, %p159
      %s162 = sadd.s32 %s161, 1
      %p165 = scmp.eq.s32.totalorder %s16, 1
      %p166 = scmp.ne.s32.totalorder %s161, %s163
      %p167 = scmp.eq.s32.totalorder %s16, 0
      %p168 = por %p166, %p167
      %p169 = scmp.ne.s32.totalorder %s161, %s163
      %p170 = scmp.eq.s32.totalorder %s21, 1
      %p171 = por %p169, %p170
      %p172 = scmp.ne.s32.totalorder %s163, %s164
      %p173 = scmp.eq.s32.totalorder %s21, 0
      %p174 = por %p172, %p173
      %p175 = scmp.ne.s32.totalorder %s163, %s164
      %p176 = scmp.eq.s32.totalorder %s22, 1
      %p177 = por %p175, %p176
      %p179 = scmp.ne.s32.totalorder %s164, %s178
      %p180 = scmp.eq.s32.totalorder %s22, 0
      %p181 = por %p179, %p180
      %s182 = ssub.s32 %s23, %s35
      %p183 = scmp.eq.s32.totalorder %s182, 0
      %s185 = sadd.s32 %s184, 1
      %s186 = scalar_select %p183, %s184, %s185
      %p189 = pneg %p183
      %p190 = scmp.eq.s32.totalorder %s16, 1
      %p191 = por %p189, %p190
      %p192 = scmp.ne.s32.totalorder %s184, %s187
      %p193 = scmp.eq.s32.totalorder %s16, 0
      %p194 = por %p192, %p193
      %p195 = scmp.ne.s32.totalorder %s184, %s187
      %p196 = scmp.eq.s32.totalorder %s21, 1
      %p197 = por %p195, %p196
      %p198 = scmp.ne.s32.totalorder %s187, %s188
      %p199 = scmp.eq.s32.totalorder %s21, 0
      %p200 = por %p198, %p199
      %p201 = scmp.ne.s32.totalorder %s187, %s188
      %p202 = scmp.eq.s32.totalorder %s22, 1
      %p203 = por %p201, %p202
      %p205 = scmp.ne.s32.totalorder %s188, %s204
      %p206 = scmp.eq.s32.totalorder %s22, 0
      %p207 = por %p205, %p206
      %p208 = scmp.le.s32.totalorder 1, %s16
      %p209 = scmp.lt.s32.totalorder %s16, 3
      %p210 = pnand %p208, %p209
      %p211 = pneg %p210
      // Predicated region
      $region9: #{tpu_custom_call.1} parent=5 // pred_check
        _
      $region10: #{tpu_custom_call.1} parent=5 // pred_check_branch
        %213 = sbr.rel (%p210) target = $region12
      $region11: #{tpu_custom_call.1} parent=5 // pred_region
        %s214 = ssub.s32 %s16, 1
        // Predicated region
        $region13: #{tpu_custom_call.1} parent=11 // pred_check
          %p215 = pneg %p80
        $region14: #{tpu_custom_call.1} parent=11 // pred_check_branch
          %217 = sbr.rel (%p215) target = $region16
        $region15: #{tpu_custom_call.1} parent=11 // pred_region
          %p218 = scmp.lt.s32.totalorder %s26, 0
          %s219 = scalar_select %p218, %s26, 0
          %s220 = smul.addr %s219, 8
          %s221 = scalar_lea.vmem %s1, %s220
        $region16: #{tpu_custom_call.1} parent=11 // pred_fallthru
          _
        // Predicated region
        $region17: #{tpu_custom_call.1} parent=11 // pred_check
          %p222 = pneg %p106
        $region18: #{tpu_custom_call.1} parent=11 // pred_check_branch
          %224 = sbr.rel (%p222) target = $region20
        $region19: #{tpu_custom_call.1} parent=11 // pred_region
          %p225 = scmp.lt.s32.totalorder %s26, 0
          %s226 = scalar_select %p225, %s26, 0
          %s227 = scalar_lea.vmem %s2, %s226
        $region20: #{tpu_custom_call.1} parent=11 // pred_fallthru
          _
        // Predicated region
        $region21: #{tpu_custom_call.1} parent=11 // pred_check
          %p228 = pneg %p132
        $region22: #{tpu_custom_call.1} parent=11 // pred_check_branch
          %230 = sbr.rel (%p228) target = $region24
        $region23: #{tpu_custom_call.1} parent=11 // pred_region
          %s231 = smul.u32 16, %s26
          %p232 = scmp.lt.s32.totalorder %s231, 15
          %s233 = scalar_select %p232, %s231, 15
          %s234 = smul.addr %s233, 8
          %s235 = scalar_lea.vmem %s3, %s234
          %s236 = smul.u32 16, %s26
        $region24: #{tpu_custom_call.1} parent=11 // pred_fallthru
          _
        // Predicated region
        $region25: #{tpu_custom_call.1} parent=11 // pred_check
          %p237 = pneg %p153
        $region26: #{tpu_custom_call.1} parent=11 // pred_check_branch
          %239 = sbr.rel (%p237) target = $region28
        $region27: #{tpu_custom_call.1} parent=11 // pred_region
          _
        $region28: #{tpu_custom_call.1} parent=11 // pred_fallthru
          _
        // Predicated region
        $region29: #{tpu_custom_call.1} parent=11 // pred_check
          %p240 = pneg %p174
        $region30: #{tpu_custom_call.1} parent=11 // pred_check_branch
          %242 = sbr.rel (%p240) target = $region32
        $region31: #{tpu_custom_call.1} parent=11 // pred_region
          _
        $region32: #{tpu_custom_call.1} parent=11 // pred_fallthru
          _
      $region12: #{tpu_custom_call.1} parent=5 // pred_fallthru
        _
      %p243 = scmp.lt.s32.totalorder %s16, 2
      // Predicated region
      $region33: #{tpu_custom_call.1} parent=5 // pred_check
        %p244 = pneg %p243
      $region34: #{tpu_custom_call.1} parent=5 // pred_check_branch
        %246 = sbr.rel (%p244) target = $region36
      $region35: #{tpu_custom_call.1} parent=5 // pred_region
        // Predicated region
        $region37: #{tpu_custom_call.1} parent=35 // pred_check
          %p247 = pneg %p48
        $region38: #{tpu_custom_call.1} parent=35 // pred_check_branch
          %249 = sbr.rel (%p247) target = $region40
        $region39: #{tpu_custom_call.1} parent=35 // pred_region
          %p250 = scmp.lt.s32.totalorder %s23, 1
          %s251 = scalar_select %p250, %s23, 1
          %s252 = smul.addr %s251, 8
          %s253 = scalar_lea.vmem %s0, %s252
        $region40: #{tpu_custom_call.1} parent=35 // pred_fallthru
          _
      $region36: #{tpu_custom_call.1} parent=5 // pred_fallthru
        _
      %p254 = scmp.le.s32.totalorder 1, %s16
      %p255 = scmp.lt.s32.totalorder %s16, 3
      %p256 = pnand %p254, %p255
      %p257 = pneg %p256
      // Predicated region
      $region41: #{tpu_custom_call.1} parent=5 // pred_check
        _
      $region42: #{tpu_custom_call.1} parent=5 // pred_check_branch
        %259 = sbr.rel (%p256) target = $region44
      $region43: #{tpu_custom_call.1} parent=5 // pred_region
        %s260 = ssub.s32 %s16, 1
        %p261 = scmp.lt.s32.totalorder %s25, 1
        %s262 = scalar_select %p261, %s25, 1
        %s263 = smul.addr %s262, 8
        %s264 = scalar_lea.vmem %s0, %s263
        %p265 = pneg %p54
        %p266 = pneg %p51
        %p267 = scmp.lt.s32.totalorder %s26, 0
        %s268 = scalar_select %p267, %s26, 0
        %s269 = smul.addr %s268, 8
        %s270 = scalar_lea.vmem %s1, %s269
        %p271 = pneg %p80
        %p272 = pneg %p77
        %p273 = scmp.lt.s32.totalorder %s26, 0
        %s274 = scalar_select %p273, %s26, 0
        %s275 = scalar_lea.vmem %s2, %s274
        %p276 = pneg %p106
        %p277 = pneg %p103
        %s278 = smul.u32 16, %s26
        %p279 = scmp.lt.s32.totalorder %s278, 15
        %s280 = scalar_select %p279, %s278, 15
        %s281 = smul.addr %s280, 8
        %s282 = scalar_lea.vmem %s3, %s281
        %p283 = pneg %p132
        %p284 = pneg %p129
        %p285 = pneg %p153
        %p286 = pneg %p150
        %p287 = pneg %p174
        %p288 = pneg %p171
        %p289 = pneg %p200
        %p290 = pneg %p197
        %s291 = sand.u32 %s187, 1
        %s292 = scalar_lea.sflag [#allocation4], %s291
        %s293 = sand.u32 %s187, 1
        %s294 = smul.addr %s293, 8
        %s295 = scalar_lea.vmem [#allocation3], %s294
        %p296 = scmp.lt.s32.totalorder %s25, 1
        %s297 = scalar_select %p296, %s25, 1
        %s298 = smul.addr %s297, 8
        %s299 = scalar_lea.vmem %s0, %s298
        %p300 = scmp.lt.s32.totalorder %s26, 0
        %s301 = scalar_select %p300, %s26, 0
        %s302 = smul.addr %s301, 8
        %s303 = scalar_lea.vmem %s1, %s302
        %p304 = scmp.lt.s32.totalorder %s26, 0
        %s305 = scalar_select %p304, %s26, 0
        %s306 = scalar_lea.vmem %s2, %s305
        %s307 = smul.u32 16, %s26
        %p308 = scmp.lt.s32.totalorder %s307, 15
        %s309 = scalar_select %p308, %s307, 15
        %s310 = smul.addr %s309, 8
        %s311 = scalar_lea.vmem %s3, %s310
        %s312 = smul.u32 16, %s26
        %v313 = vld [vmem:[%s299] sm:$0xff]
        %v314 = vld [vmem:[%s303] sm:$0xff]
        %v315 = vld [vmem:[%s303 + $0x8] sm:$0xff]
        %v316 = vld [vmem:[%s303 + $0x10] sm:$0xff]
        %v317 = vld [vmem:[%s303 + $0x18] sm:$0xff]
        %v318 = vld [vmem:[%s306] sm:$0x1]
        %v320 = vperm.slane %v318, 0
        %vm322 = vcmask 261120
        %v324 = vsel %vm322, %v313, 0
        %326 = vmatpush.msra.mxu0 0.0
        %327 = vmatpush.msra.mxu0 0.0
        %328 = vmatpush.msra.mxu0 0.0
        %329 = vmatpush.msra.mxu0 0.0
        %330 = vmatpush.msra.mxu0 0.0
        %331 = vmatpush.msra.mxu0 0.0
        %332 = vmatpush.msra.mxu0 0.0
        %333 = vmatpush.msra.mxu0 0.0
        %334 = vmatpush.msra.mxu0 0.0
        %335 = vmatpush.msra.mxu0 0.0
        %336 = vmatpush.msra.mxu0 0.0
        %337 = vmatpush.msra.mxu0 0.0
        %338 = vmatpush.msra.mxu0 %v317
        %339 = vmatpush.msra.mxu0 %v316
        %340 = vmatpush.msra.mxu0 %v315
        %341 = vmatpush.msra.mxu0 %v314
        %342 = vmatmul.f32.gmra.mxu0 %v324
        %v343 = vpop.f32.mrf.mxu0
        %v344 = vadd.f32 %v320, %v343
        %345 = vdwg.mxu0
        %v346 = vmul.f32 %v344, 0.5
        %v347 = vmul.f32 %v344, 0.044715
        %v348 = vmul.f32 %v347, %v344
        %v349 = vmul.f32 %v348, %v344
        %v350 = vadd.f32 %v344, %v349
        %v351 = vmul.f32 %v350, 0.7978846
        %v352 = vtanh.pop %v351
        %v353 = vadd.f32 %v352, 1.0
        %v354 = vmul.f32 %v346, %v353
        %v355 = vld [vmem:[%s311] sm:$0xff]
        %v356 = vld [vmem:[%s311 + $0x8] sm:$0xff]
        %v357 = vld [vmem:[%s311 + $0x10] sm:$0xff]
        %v358 = vld [vmem:[%s311 + $0x18] sm:$0xff]
        %v359 = vld [vmem:[%s311 + $0x20] sm:$0xff]
        %v360 = vld [vmem:[%s311 + $0x28] sm:$0xff]
        %v361 = vld [vmem:[%s311 + $0x30] sm:$0xff]
        %v362 = vld [vmem:[%s311 + $0x38] sm:$0xff]
        %v363 = vld [vmem:[%s311 + $0x40] sm:$0xff]
        %v364 = vld [vmem:[%s311 + $0x48] sm:$0xff]
        %v365 = vld [vmem:[%s311 + $0x50] sm:$0xff]
        %v366 = vld [vmem:[%s311 + $0x58] sm:$0xff]
        %v367 = vld [vmem:[%s311 + $0x60] sm:$0xff]
        %v368 = vld [vmem:[%s311 + $0x68] sm:$0xff]
        %v369 = vld [vmem:[%s311 + $0x70] sm:$0xff]
        %v370 = vld [vmem:[%s311 + $0x78] sm:$0xff]
        %v371 = vld [vmem:[%s4] sm:$0x1]
        %v373 = vperm.slane %v371, 0
        %375 = vmatpush.msra.mxu0 %v370
        %376 = vmatpush.msra.mxu0 %v369
        %377 = vmatpush.msra.mxu0 %v368
        %378 = vmatpush.msra.mxu0 %v367
        %379 = vmatpush.msra.mxu0 %v366
        %380 = vmatpush.msra.mxu0 %v365
        %381 = vmatpush.msra.mxu0 %v364
        %382 = vmatpush.msra.mxu0 %v363
        %383 = vmatpush.msra.mxu0 %v362
        %384 = vmatpush.msra.mxu0 %v361
        %385 = vmatpush.msra.mxu0 %v360
        %386 = vmatpush.msra.mxu0 %v359
        %387 = vmatpush.msra.mxu0 %v358
        %388 = vmatpush.msra.mxu0 %v357
        %389 = vmatpush.msra.mxu0 %v356
        %390 = vmatpush.msra.mxu0 %v355
        %391 = vmatmul.f32.gmra.mxu0 %v354
        %v392 = vpop.f32.mrf.mxu0
        %v393 = vadd.f32 %v373, %v392
        %394 = vdwg.mxu0
        %s395 = sld [smem:[#allocation2]]
        %v396 = vstv %s395
        %v397 = vmul.f32 %v393, %v396
        %398 = vst.msk [vmem:[%s295] sm:$0xff] %vm322, %v397
        %s399 = sand.u32 %s187, 1
        %s400 = scalar_lea.sflag [#allocation4], %s399
        %s401 = sand.u32 %s187, 1
        %s402 = smul.addr %s401, 8
        %s403 = scalar_lea.vmem [#allocation3], %s402
        // Predicated region
        $region45: #{tpu_custom_call.1} parent=43 // pred_check
          %p404 = pneg %p197
        $region46: #{tpu_custom_call.1} parent=43 // pred_check_branch
          %406 = sbr.rel (%p404) target = $region48
        $region47: #{tpu_custom_call.1} parent=43 // pred_region
          %408 = vsyncadd %s400, 0
          %s409 = smul.addr %s25, 8
          %s410 = scalar_lea.hbm %s6, %s409
          %s412 = sshll.u32 %s403, 4
          %s413 = int_to_ptr.vmem [resolvable:$true] %s412
          %s414 = sshll.u32 %s410, 4
          %s415 = int_to_ptr.hbm [resolvable:$true] %s414
          %417 = dma.vmem_to_hbm [thread:$0]  %s413, 128, %s415, %s400
        $region48: #{tpu_custom_call.1} parent=43 // pred_fallthru
          _
      $region44: #{tpu_custom_call.1} parent=5 // pred_fallthru
        _
      %p418 = scmp.le.s32.totalorder 2, %s16
      // Predicated region
      $region49: #{tpu_custom_call.1} parent=5 // pred_check
        %p419 = pneg %p418
      $region50: #{tpu_custom_call.1} parent=5 // pred_check_branch
        %421 = sbr.rel (%p419) target = $region52
      $region51: #{tpu_custom_call.1} parent=5 // pred_region
        %s422 = ssub.s32 %s16, 2
        // Predicated region
        $region53: #{tpu_custom_call.1} parent=51 // pred_check
          %p423 = pneg %p203
        $region54: #{tpu_custom_call.1} parent=51 // pred_check_branch
          %425 = sbr.rel (%p423) target = $region56
        $region55: #{tpu_custom_call.1} parent=51 // pred_region
          %s426 = sand.u32 %s188, 1
          %s427 = scalar_lea.sflag [#allocation4], %s426
          %s428 = sand.u32 %s188, 1
          %s429 = smul.addr %s428, 8
          %s430 = scalar_lea.vmem [#allocation3], %s429
          %432 = dma.done %s427, 128
        $region56: #{tpu_custom_call.1} parent=51 // pred_fallthru
          _
      $region52: #{tpu_custom_call.1} parent=5 // pred_fallthru
        _
    $region6: #{tpu_custom_call.1} parent=1 // loop_footer
      %s20 = sadd.s32 1, %s16
    $region7: #{tpu_custom_call.1} parent=1 // loop_footer_branch
      %15 = sbr.rel target = $region3
    $region8: #{tpu_custom_call.1} parent=1 // loop_exit
      _
    %433 = vsyncpa [#allocation4], 1
    %s434 = scalar_lea.sflag [#allocation4], 1
    %435 = vsyncpa %s434, 1

</llo_original>
